<compile_context>
chip_gen: v7x
topology: tpu7x:2x2x1
jax: 0.10.0
libtpu: 0.0.40
codegen_flags: <defaults>
</compile_context>

<pallas_src>
import jax
import jax.numpy as jnp
from jax.experimental import pallas as pl
from jax.experimental.pallas import tpu as pltpu


def _round_up(n, m):
    return ((n + m - 1) // m) * m


def _pow2_ge8(n):
    """Smallest power of two that is >= max(n, 8)."""
    return 1 << max(3, (int(n) - 1).bit_length())


def _mlp_d_kernel(x_ref, att_ref, w1x_ref, w1a_ref, bw_ref, part_ref, acc_ref):
    # x_ref   : (tm, res)   bf16     att_ref : (tm, att)  bf16
    # w1x_ref : (res, tn)   bf16     w1a_ref : (att, tn)  bf16
    # bw_ref  : (2, tn)     f32      row 0 = b1 tile, row 1 = w2 row tile
    # part_ref: (1, tm, 1)  f32      pre-bias partial fc2 sum for this split
    # acc_ref : (tm, 128)   f32      lane-dense fc2 accumulator
    j = pl.program_id(2)

    @pl.when(j == 0)
    def _():
        acc_ref[...] = jnp.zeros_like(acc_ref)

    # fc1 tile: fused "concat" as two K-chunks of one reduction (MXU, f32 acc).
    z1 = jnp.dot(x_ref[...], w1x_ref[...], preferred_element_type=jnp.float32)
    z1 = z1 + jnp.dot(att_ref[...], w1a_ref[...],
                      preferred_element_type=jnp.float32)
    z1 = z1 + bw_ref[0:1, :]

    # LeakyReLU(0.2): single vmax instead of compare+select.
    a1 = jnp.maximum(z1, 0.2 * z1)

    # fc2 partial: VPU multiply, then lane-aligned 128-chunk adds into the
    # lane-dense accumulator (defers the XLU cross-lane reduce to the end).
    contrib = a1 * bw_ref[1:2, :]
    tn = contrib.shape[-1]
    partial = contrib[:, 0:128]
    for c in range(1, tn // 128):
        partial = partial + contrib[:, c * 128:(c + 1) * 128]
    acc_ref[...] += partial

    @pl.when(j == pl.num_programs(2) - 1)
    def _():
        # Single 128 -> 1 cross-lane reduce per (split, batch-tile).
        part_ref[0] = jnp.sum(acc_ref[...], axis=-1, keepdims=True)


def mlp_d_forward(x, att, w1, b1, w2, b2, *, stream_dtype=jnp.bfloat16):
    """MLP_D forward.

    x : (B, resSize), att : (B, attSize)
    w1: (resSize+attSize, ndh)  stored [in, out] (pre-transposed vs torch)
    b1: (ndh,)   w2: (ndh, 1)   b2: (1,)
    Returns (B, 1) float32 == sigmoid(lrelu_0.2(concat(x,att)@w1+b1) @ w2 + b2).
    """
    B, res = x.shape
    _, attsz = att.shape
    D, ndh = w1.shape
    assert D == res + attsz, "w1 first dim must equal resSize + attSize"

    # ---- tile selection -----------------------------------------------------
    ndh_pad = _round_up(ndh, 128)
    tn = next(t for t in (1024, 512, 256, 128) if ndh_pad % t == 0)
    tm = min(1024, _pow2_ge8(_round_up(B, 8)))

    sbytes = jnp.dtype(stream_dtype).itemsize

    def footprint(tm_, tn_):
        stream = (tm_ * (res + attsz) + (res + attsz) * tn_) * sbytes
        small = 2 * tn_ * 4 + tm_ * 4
        interm = 3 * tm_ * tn_ * 4          # z1 / a1 / contrib working set
        return 2 * (stream + small) + tm_ * 128 * 4 + interm

    budget = 26 << 20                       # keep tiles well inside v7x VMEM
    while footprint(tm, tn) > budget and (tm > 8 or tn > 128):
        if tm > 8 and (tn <= 128 or tm >= tn):
            tm //= 2
        elif tn > 128:
            tn //= 2
        else:
            break

    B_pad = _round_up(B, tm)
    bt = B_pad // tm                        # batch tiles
    jt = ndh_pad // tn                      # total ndh tiles
    # Split the ndh range across the 2 TensorCores only when the batch axis
    # gives the second core nothing; each split then streams half of W1.
    splits = 2 if (bt == 1 and jt >= 2 and jt % 2 == 0) else 1
    jper = jt // splits

    # ---- operand prep: zero-pad to tile multiples, cast streamed ops --------
    if B_pad != B:
        x = jnp.pad(x, ((0, B_pad - B), (0, 0)))
        att = jnp.pad(att, ((0, B_pad - B), (0, 0)))
    if ndh_pad != ndh:
        w1 = jnp.pad(w1, ((0, 0), (0, ndh_pad - ndh)))
        b1 = jnp.pad(b1, (0, ndh_pad - ndh))
        w2 = jnp.pad(w2, ((0, ndh_pad - ndh), (0, 0)))

    x_s = x.astype(stream_dtype)
    att_s = att.astype(stream_dtype)
    w1x = w1[:res].astype(stream_dtype)      # (res, ndh_pad)
    w1a = w1[res:].astype(stream_dtype)      # (att, ndh_pad)
    # TODO(synk): optional int8 (v5e/v6e) / fp8 (v7x) W1 quantization path with
    # per-tile scales folded into the f32 epilogue.

    bw = jnp.concatenate(
        [b1.reshape(1, ndh_pad).astype(jnp.float32),
         w2.reshape(1, ndh_pad).astype(jnp.float32)], axis=0)   # (2, ndh_pad)

    vmem_limit = int(max(16 << 20, min(40 << 20, footprint(tm, tn) + (8 << 20))))

    partials = pl.pallas_call(
        _mlp_d_kernel,
        out_shape=jax.ShapeDtypeStruct((splits, B_pad, 1), jnp.float32),
        grid=(splits, bt, jper),
        in_specs=[
            pl.BlockSpec((tm, res),   lambda s, i, j: (i, 0)),            # x rows
            pl.BlockSpec((tm, attsz), lambda s, i, j: (i, 0)),            # att rows
            pl.BlockSpec((res, tn),   lambda s, i, j: (0, s * jper + j)),  # W1[:res]
            pl.BlockSpec((attsz, tn), lambda s, i, j: (0, s * jper + j)),  # W1[res:]
            pl.BlockSpec((2, tn),     lambda s, i, j: (0, s * jper + j)),  # [b1; w2]
        ],
        out_specs=pl.BlockSpec((1, tm, 1), lambda s, i, j: (s, i, 0)),
        scratch_shapes=[pltpu.VMEM((tm, 128), jnp.float32)],
        compiler_params=pltpu.CompilerParams(
            dimension_semantics=("parallel", "parallel", "arbitrary"),
            vmem_limit_bytes=vmem_limit,
        ),
    )(x_s, att_s, w1x, w1a, bw)

    # Tiny finalize: combine ndh-split partials, add b2, sigmoid, un-pad rows.
    logits = partials.sum(axis=0)[:B] + b2.astype(jnp.float32).reshape(1, 1)
    return jax.nn.sigmoid(logits)


def init_params(key, res_size, att_size, ndh, dtype=jnp.float32):
    """Deterministic init mirroring weights_init: Linear W ~ N(0, 0.02), b = 0."""
    k1, k2 = jax.random.split(key)
    d = res_size + att_size
    # Stored as [in, out] (pre-transposed relative to torch's [out, in]).
    w1 = (0.02 * jax.random.normal(k1, (d, ndh), dtype=jnp.float32)).astype(dtype)
    b1 = jnp.zeros((ndh,), jnp.float32)
    w2 = (0.02 * jax.random.normal(k2, (ndh, 1), dtype=jnp.float32)).astype(dtype)
    b2 = jnp.zeros((1,), jnp.float32)
    return w1, b1, w2, b2


if __name__ == "__main__":
    # Small shapes consistent with the module: opt.resSize, opt.attSize, opt.ndh
    B, RES, ATT, NDH = 2, 32, 16, 32

    key = jax.random.PRNGKey(0)
    kx, katt, kp = jax.random.split(key, 3)
    x = jax.random.normal(kx, (B, RES), dtype=jnp.float32)
    att = jax.random.normal(katt, (B, ATT), dtype=jnp.float32)
    w1, b1, w2, b2 = init_params(kp, RES, ATT, NDH)

    out = jax.block_until_ready(mlp_d_forward(x, att, w1, b1, w2, b2))

    # Pure-JAX reference replicating the bf16 streaming quantization.
    q = lambda a: a.astype(jnp.bfloat16).astype(jnp.float32)
    h = jnp.concatenate((q(x), q(att)), axis=1)
    z1 = h @ q(w1) + b1
    a1 = jnp.maximum(z1, 0.2 * z1)
    ref = jax.nn.sigmoid(a1 @ w2 + b2)

    assert out.shape == (B, 1)
    assert jnp.allclose(out, ref, atol=2e-4, rtol=2e-4), (out, ref)
    print("KERNEL_OK")
</pallas_src>

<mosaic_0001>
module attributes {stable_mosaic.version = 11 : i64} {
  func.func @_mlp_d_kernel(%arg0: i32, %arg1: i32, %arg2: i32, %arg3: memref<8x32xbf16, #tpu.memory_space<vmem>>, %arg4: memref<8x16xbf16, #tpu.memory_space<vmem>>, %arg5: memref<32x128xbf16, #tpu.memory_space<vmem>>, %arg6: memref<16x128xbf16, #tpu.memory_space<vmem>>, %arg7: memref<2x128xf32, #tpu.memory_space<vmem>>, %arg8: memref<1x8x1xf32, #tpu.memory_space<vmem>>, %arg9: memref<8x128xf32, #tpu.memory_space<vmem>>) attributes {dimension_semantics = [#tpu.dimension_semantics<parallel>, #tpu.dimension_semantics<parallel>, #tpu.dimension_semantics<arbitrary>], iteration_bounds = array<i64: 1, 1, 1>, scalar_prefetch = 0 : i64, scratch_operands = 1 : i64, tpu.core_type = #tpu.core_type<tc>, window_params = [{transform_indices = @transform_0, window_bounds = array<i64: 8, 32>}, {transform_indices = @transform_1, window_bounds = array<i64: 8, 16>}, {transform_indices = @transform_2, window_bounds = array<i64: 32, 128>}, {transform_indices = @transform_3, window_bounds = array<i64: 16, 128>}, {transform_indices = @transform_4, window_bounds = array<i64: 2, 128>}, {transform_indices = @transform_5, window_bounds = array<i64: 1, 8, 1>}]} {
    %c0_i32 = arith.constant 0 : i32
    %0 = arith.cmpi eq, %arg2, %c0_i32 : i32
    %1 = arith.extui %0 : i1 to i32
    %c0_i32_0 = arith.constant 0 : i32
    %2 = arith.cmpi ne, %1, %c0_i32_0 : i32
    scf.if %2 {
      %cst_19 = arith.constant 0.000000e+00 : f32
      %25 = vector.broadcast %cst_19 : f32 to vector<8x128xf32>
      %c0_20 = arith.constant 0 : index
      %c0_21 = arith.constant 0 : index
      %26 = vector.load %arg9[%c0_20, %c0_21] : memref<8x128xf32, #tpu.memory_space<vmem>>, vector<8x128xf32>
      tpu.vector_store %arg9[%c0_20, %c0_21], %25 {strides = array<i32>} : memref<8x128xf32, #tpu.memory_space<vmem>>, vector<8x128xf32>,
    } else {
    }
    %c0 = arith.constant 0 : index
    %c0_1 = arith.constant 0 : index
    %3 = vector.load %arg3[%c0, %c0_1] : memref<8x32xbf16, #tpu.memory_space<vmem>>, vector<8x32xbf16>
    %c0_2 = arith.constant 0 : index
    %c0_3 = arith.constant 0 : index
    %4 = vector.load %arg5[%c0_2, %c0_3] : memref<32x128xbf16, #tpu.memory_space<vmem>>, vector<32x128xbf16>
    %cst = arith.constant dense<0.000000e+00> : vector<8x128xf32>
    %5 = tpu.matmul %3, %4, %cst {dimension_numbers = #tpu.dot_dimension_numbers<[1], [0], [0], [1], [0, 0, 1, 1], [], []>} : vector<8x32xbf16>, vector<32x128xbf16>, vector<8x128xf32> -> vector<8x128xf32>
    %c0_4 = arith.constant 0 : index
    %c0_5 = arith.constant 0 : index
    %6 = vector.load %arg4[%c0_4, %c0_5] : memref<8x16xbf16, #tpu.memory_space<vmem>>, vector<8x16xbf16>
    %c0_6 = arith.constant 0 : index
    %c0_7 = arith.constant 0 : index
    %7 = vector.load %arg6[%c0_6, %c0_7] : memref<16x128xbf16, #tpu.memory_space<vmem>>, vector<16x128xbf16>
    %cst_8 = arith.constant dense<0.000000e+00> : vector<8x128xf32>
    %8 = tpu.matmul %6, %7, %cst_8 {dimension_numbers = #tpu.dot_dimension_numbers<[1], [0], [0], [1], [0, 0, 1, 1], [], []>} : vector<8x16xbf16>, vector<16x128xbf16>, vector<8x128xf32> -> vector<8x128xf32>
    %9 = arith.addf %5, %8 : vector<8x128xf32>
    %c0_9 = arith.constant 0 : index
    %c0_10 = arith.constant 0 : index
    %10 = vector.load %arg7[%c0_9, %c0_10] : memref<2x128xf32, #tpu.memory_space<vmem>>, vector<1x128xf32>
    %11 = vector.broadcast %10 : vector<1x128xf32> to vector<8x128xf32>
    %12 = arith.addf %9, %11 : vector<8x128xf32>
    %cst_11 = arith.constant 2.000000e-01 : f32
    %13 = vector.broadcast %cst_11 : f32 to vector<8x128xf32>
    %14 = arith.mulf %13, %12 : vector<8x128xf32>
    %15 = arith.maximumf %12, %14 : vector<8x128xf32>
    %c1 = arith.constant 1 : index
    %c0_12 = arith.constant 0 : index
    %16 = vector.load %arg7[%c1, %c0_12] : memref<2x128xf32, #tpu.memory_space<vmem>>, vector<1x128xf32>
    %17 = vector.broadcast %16 : vector<1x128xf32> to vector<8x128xf32>
    %18 = arith.mulf %15, %17 : vector<8x128xf32>
    %c0_13 = arith.constant 0 : index
    %c0_14 = arith.constant 0 : index
    %19 = vector.load %arg9[%c0_13, %c0_14] : memref<8x128xf32, #tpu.memory_space<vmem>>, vector<8x128xf32>
    %20 = arith.addf %19, %18 : vector<8x128xf32>
    %c0_15 = arith.constant 0 : index
    %c0_16 = arith.constant 0 : index
    %21 = vector.load %arg9[%c0_15, %c0_16] : memref<8x128xf32, #tpu.memory_space<vmem>>, vector<8x128xf32>
    tpu.vector_store %arg9[%c0_15, %c0_16], %20 {strides = array<i32>} : memref<8x128xf32, #tpu.memory_space<vmem>>, vector<8x128xf32>,
    %c0_i32_17 = arith.constant 0 : i32
    %22 = arith.cmpi eq, %arg2, %c0_i32_17 : i32
    %23 = arith.extui %22 : i1 to i32
    %c0_i32_18 = arith.constant 0 : i32
    %24 = arith.cmpi ne, %23, %c0_i32_18 : i32
    scf.if %24 {
      %c0_19 = arith.constant 0 : index
      %c0_20 = arith.constant 0 : index
      %25 = vector.load %arg9[%c0_19, %c0_20] : memref<8x128xf32, #tpu.memory_space<vmem>>, vector<8x128xf32>
      %cst_21 = arith.constant dense<0.000000e+00> : vector<8xf32>
      %26 = vector.multi_reduction <add>, %25, %cst_21 [1] : vector<8x128xf32> to vector<8xf32>
      %27 = vector.shape_cast %26 : vector<8xf32> to vector<8x1xf32>
      %c0_22 = arith.constant 0 : index
      %c0_23 = arith.constant 0 : index
      %c0_24 = arith.constant 0 : index
      %28 = vector.load %arg8[%c0_22, %c0_23, %c0_24] : memref<1x8x1xf32, #tpu.memory_space<vmem>>, vector<1x8x1xf32>
      %29 = vector.shape_cast %28 : vector<1x8x1xf32> to vector<8x1xf32>
      %30 = vector.shape_cast %27 : vector<8x1xf32> to vector<1x8x1xf32>
      tpu.vector_store %arg8[%c0_22, %c0_23, %c0_24], %30 {strides = array<i32>} : memref<1x8x1xf32, #tpu.memory_space<vmem>>, vector<1x8x1xf32>,
    } else {
    }
    return
  }
  func.func @transform_0(%arg0: i32, %arg1: i32, %arg2: i32) -> (i32, i32) {
    %c0_i32 = arith.constant 0 : i32
    %c0_i32_0 = arith.constant 0 : i32
    return %arg1, %c0_i32 : i32, i32
  }
  func.func @transform_1(%arg0: i32, %arg1: i32, %arg2: i32) -> (i32, i32) {
    %c0_i32 = arith.constant 0 : i32
    %c0_i32_0 = arith.constant 0 : i32
    return %arg1, %c0_i32 : i32, i32
  }
  func.func @transform_2(%arg0: i32, %arg1: i32, %arg2: i32) -> (i32, i32) {
    %c1_i32 = arith.constant 1 : i32
    %0 = arith.muli %arg0, %c1_i32 : i32
    %1 = arith.addi %0, %arg2 : i32
    %c0_i32 = arith.constant 0 : i32
    %c0_i32_0 = arith.constant 0 : i32
    return %c0_i32, %1 : i32, i32
  }
  func.func @transform_3(%arg0: i32, %arg1: i32, %arg2: i32) -> (i32, i32) {
    %c1_i32 = arith.constant 1 : i32
    %0 = arith.muli %arg0, %c1_i32 : i32
    %1 = arith.addi %0, %arg2 : i32
    %c0_i32 = arith.constant 0 : i32
    %c0_i32_0 = arith.constant 0 : i32
    return %c0_i32, %1 : i32, i32
  }
  func.func @transform_4(%arg0: i32, %arg1: i32, %arg2: i32) -> (i32, i32) {
    %c1_i32 = arith.constant 1 : i32
    %0 = arith.muli %arg0, %c1_i32 : i32
    %1 = arith.addi %0, %arg2 : i32
    %c0_i32 = arith.constant 0 : i32
    %c0_i32_0 = arith.constant 0 : i32
    return %c0_i32, %1 : i32, i32
  }
  func.func @transform_5(%arg0: i32, %arg1: i32, %arg2: i32) -> (i32, i32, i32) {
    %c0_i32 = arith.constant 0 : i32
    %c0_i32_0 = arith.constant 0 : i32
    return %arg0, %arg1, %c0_i32 : i32, i32, i32
  }
}

</mosaic_0001>

<llo_original>
// kernel: tpu_custom_call.1
$region0: #{tpu_custom_call.1}
  #allocation0 [shape = 'u32[]', space=smem, size = 0x4, offset = 0x4, fixed_abs, tag = 'smem constant byte address 0x4 - core index']
  #allocation1 [shape = 'u32[144,128]{1,0:T(1,128)}', space=vmem, size = 0x12000, scoped, tag = 'internal scratch']
  #allocation2 [shape = 'f32[8,128]{1,0:T(8,128)}', space=vmem, size = 0x1000, scoped, tag = 'scratch operand']
  %s0 = inlined_call_operand.hbm [shape: bf16[8,32], index: 0, kind: input, shape index: {}]
  %s1 = inlined_call_operand.hbm [shape: bf16[8,16], index: 1, kind: input, shape index: {}]
  %s2 = inlined_call_operand.hbm [shape: bf16[32,128], index: 2, kind: input, shape index: {}]
  %s3 = inlined_call_operand.vmem [shape: bf16[16,128], index: 3, kind: input, shape index: {}]
  %s4 = inlined_call_operand.vmem [shape: f32[2,128], index: 4, kind: input, shape index: {}]
  %s5 = inlined_call_operand.vmem [shape: f32[1,8,1], index: 5, kind: output, shape index: {}]
  %s6 = sld [smem:[#allocation0]]
  $region50: #{tpu_custom_call.1} parent=0
    _
  %s8 = ssub.s32 1, %s6
  %s9 = scalar_select 0, %s8, %s6
  $region1: #{tpu_custom_call.1} parent=0
    #allocation3 [shape = 'u8[2048]{0}', space=vmem, size = 0x800, scoped, tag = 'input window, operand 0, single buffered']
    #allocation4 [shape = 's32[1]{0}', space=sflag, size = 0x4, scoped, tag = 'scoped memory for tpu_custom_call.1']
    #allocation5 [shape = 'u8[2048]{0}', space=vmem, size = 0x800, scoped, tag = 'input window, operand 1, single buffered']
    #allocation6 [shape = 's32[1]{0}', space=sflag, size = 0x4, scoped, tag = 'scoped memory for tpu_custom_call.1']
    #allocation7 [shape = 'u8[8192]{0}', space=vmem, size = 0x2000, scoped, tag = 'input window, operand 2, single buffered']
    %10 = vsyncpa [#allocation4], 0
    %11 = vsyncpa [#allocation6], 0
    // Predicated region
    $region2: #{tpu_custom_call.1} parent=1 // pred_check
      _
    $region3: #{tpu_custom_call.1} parent=1 // pred_check_branch
      %13 = sbr.rel (0) target = $region5
    $region4: #{tpu_custom_call.1} parent=1 // pred_region
      %s15 = ssub.s32 64, 64
      %16 = vsyncadd [#allocation4], %s15
      %s18 = sshll.u32 [#allocation3], 4
      %s19 = int_to_ptr.vmem [resolvable:$true] %s18
      %21 = dma.hbm_to_vmem [thread:$0]  %s0, 64, %s19, [#allocation4]
    $region5: #{tpu_custom_call.1} parent=1 // pred_fallthru
      _
    // Predicated region
    $region6: #{tpu_custom_call.1} parent=1 // pred_check
      _
    $region7: #{tpu_custom_call.1} parent=1 // pred_check_branch
      %23 = sbr.rel (0) target = $region9
    $region8: #{tpu_custom_call.1} parent=1 // pred_region
      %s25 = ssub.s32 64, 64
      %26 = vsyncadd [#allocation6], %s25
      %s28 = sshll.u32 [#allocation5], 4
      %s29 = int_to_ptr.vmem [resolvable:$true] %s28
      %31 = dma.hbm_to_vmem [thread:$0]  %s1, 64, %s29, [#allocation6]
    $region9: #{tpu_custom_call.1} parent=1 // pred_fallthru
      _
    // Predicated region
    $region10: #{tpu_custom_call.1} parent=1 // pred_check
      _
    $region11: #{tpu_custom_call.1} parent=1 // pred_check_branch
      %33 = sbr.rel (0) target = $region13
    $region12: #{tpu_custom_call.1} parent=1 // pred_region
      %s34 = sadd.s32 0, 0
      %s36 = ssub.s32 256, 256
      %37 = vsyncadd [#allocation6], %s36
      %s38 = smul.addr %s34, 64
      %s39 = scalar_lea.hbm %s2, %s38
      %s40 = sshll.u32 [#allocation7], 4
      %s41 = int_to_ptr.vmem [resolvable:$true] %s40
      %46 = dma.hbm_to_vmem [thread:$0]  %s39, 256, %s41, [#allocation6], 64, 64, 4
    $region13: #{tpu_custom_call.1} parent=1 // pred_fallthru
      _
    // Predicated region
    $region14: #{tpu_custom_call.1} parent=1 // pred_check
      _
    $region15: #{tpu_custom_call.1} parent=1 // pred_check_branch
      %48 = sbr.rel (0) target = $region17
    $region16: #{tpu_custom_call.1} parent=1 // pred_region
      %s49 = sadd.s32 0, 0
      %p50 = scmp.lt.s32.totalorder %s49, 0
      %s51 = scalar_select %p50, %s49, 0
      %s52 = smul.addr %s51, 4
      %s53 = scalar_lea.vmem %s3, %s52
      %s54 = sadd.s32 0, 0
    $region17: #{tpu_custom_call.1} parent=1 // pred_fallthru
      _
    // Predicated region
    $region18: #{tpu_custom_call.1} parent=1 // pred_check
      _
    $region19: #{tpu_custom_call.1} parent=1 // pred_check_branch
      %56 = sbr.rel (0) target = $region21
    $region20: #{tpu_custom_call.1} parent=1 // pred_region
      %s57 = sadd.s32 0, 0
      %p58 = scmp.lt.s32.totalorder %s57, 0
      %s59 = scalar_select %p58, %s57, 0
      %s60 = smul.addr %s59, 2
      %s61 = scalar_lea.vmem %s4, %s60
      %s62 = sadd.s32 0, 0
    $region21: #{tpu_custom_call.1} parent=1 // pred_fallthru
      _
    // Predicated region
    $region22: #{tpu_custom_call.1} parent=1 // pred_check
      _
    $region23: #{tpu_custom_call.1} parent=1 // pred_check_branch
      %64 = sbr.rel (0) target = $region25
    $region24: #{tpu_custom_call.1} parent=1 // pred_region
      %65 = dma.done [#allocation4], 64
    $region25: #{tpu_custom_call.1} parent=1 // pred_fallthru
      _
    // Predicated region
    $region26: #{tpu_custom_call.1} parent=1 // pred_check
      _
    $region27: #{tpu_custom_call.1} parent=1 // pred_check_branch
      %67 = sbr.rel (0) target = $region29
    $region28: #{tpu_custom_call.1} parent=1 // pred_region
      %68 = dma.done [#allocation6], 64
    $region29: #{tpu_custom_call.1} parent=1 // pred_fallthru
      _
    // Predicated region
    $region30: #{tpu_custom_call.1} parent=1 // pred_check
      _
    $region31: #{tpu_custom_call.1} parent=1 // pred_check_branch
      %70 = sbr.rel (0) target = $region33
    $region32: #{tpu_custom_call.1} parent=1 // pred_region
      %71 = dma.done [#allocation6], 256
    $region33: #{tpu_custom_call.1} parent=1 // pred_fallthru
      _
    %s72 = sadd.s32 0, 0
    %p73 = scmp.lt.s32.totalorder %s72, 0
    %s74 = scalar_select %p73, %s72, 0
    %s75 = smul.addr %s74, 4
    %s76 = scalar_lea.vmem %s3, %s75
    %s77 = sadd.s32 0, 0
    %p78 = scmp.lt.s32.totalorder %s77, 0
    %s79 = scalar_select %p78, %s77, 0
    %s80 = smul.addr %s79, 2
    %s81 = scalar_lea.vmem %s4, %s80
    %s82 = sadd.s32 0, 0
    %s83 = sadd.s32 0, 0
    %p84 = scmp.lt.s32.totalorder %s83, 0
    %s85 = scalar_select %p84, %s83, 0
    %s86 = smul.addr %s85, 4
    %s87 = scalar_lea.vmem %s3, %s86
    %s88 = sadd.s32 0, 0
    %s89 = sadd.s32 0, 0
    %p90 = scmp.lt.s32.totalorder %s89, 0
    %s91 = scalar_select %p90, %s89, 0
    %s92 = smul.addr %s91, 2
    %s93 = scalar_lea.vmem %s4, %s92
    %s94 = sadd.s32 0, 0
    %p96 = scmp.eq.s32.totalorder 0, 0
    // Predicated region
    $region34: #{tpu_custom_call.1} parent=1 // pred_check
      %p97 = pneg %p96
    $region35: #{tpu_custom_call.1} parent=1 // pred_check_branch
      %99 = sbr.rel (%p97) target = $region37
    $region36: #{tpu_custom_call.1} parent=1 // pred_region
      %100 = vst [vmem:[#allocation2] sm:$0xff] 0.0
    $region37: #{tpu_custom_call.1} parent=1 // pred_fallthru
      _
    %v101 = vld [vmem:[#allocation3] sm:$0xf]
    %v102 = vld [vmem:[#allocation7] sm:$0xf]
    %v103 = vld [vmem:[#allocation7 + $0x4] sm:$0xf]
    %v104 = vld [vmem:[#allocation7 + $0x8] sm:$0xf]
    %v105 = vld [vmem:[#allocation7 + $0xc] sm:$0xf]
    %v106 = vld [vmem:[#allocation5] sm:$0xf]
    %v107 = vld [vmem:[%s87] sm:$0xf]
    %v108 = vld [vmem:[%s87 + $0x4] sm:$0xf]
    %v111 = vunpack.c.l.b16 %v107
    %v112 = vunpack.c.l.b16 %v108
    %v113 = vpack.c.b16 %v112, %v111
    %vm115 = vcmask 130048
    %v117 = vsel %vm115, %v106, 0
    %119 = vmatprep.subr.bf16.mxu0 0
    %120 = vmatpush1.bf16.msra.mxu0 %v113
    %121 = vmatprep.subr.bf16.mxu0 0
    %122 = vmatpush1.bf16.msra.mxu0 0
    %123 = vmatprep.subr.bf16.mxu0 0
    %124 = vmatpush1.bf16.msra.mxu0 0
    %125 = vmatprep.subr.bf16.mxu0 0
    %126 = vmatpush1.bf16.msra.mxu0 0
    %127 = vmatprep.subr.bf16.mxu0 0
    %128 = vmatpush1.bf16.msra.mxu0 0
    %129 = vmatprep.subr.bf16.mxu0 0
    %130 = vmatpush1.bf16.msra.mxu0 0
    %131 = vmatprep.subr.bf16.mxu0 0
    %132 = vmatpush1.bf16.msra.mxu0 0
    %133 = vmatprep.subr.bf16.mxu0 0
    %134 = vmatpush1.bf16.msra.mxu0 0
    %135 = vmatprep.subr.bf16.mxu0 0
    %136 = vmatpush1.bf16.msra.mxu0 0
    %137 = vmatprep.subr.bf16.mxu0 0
    %138 = vmatpush1.bf16.msra.mxu0 0
    %139 = vmatprep.subr.bf16.mxu0 0
    %140 = vmatpush1.bf16.msra.mxu0 0
    %141 = vmatprep.subr.bf16.mxu0 0
    %142 = vmatpush1.bf16.msra.mxu0 0
    %143 = vmatprep.subr.bf16.mxu0 0
    %144 = vmatpush1.bf16.msra.mxu0 0
    %145 = vmatprep.subr.bf16.mxu0 0
    %146 = vmatpush1.bf16.msra.mxu0 0
    %147 = vmatprep.subr.bf16.mxu0 0
    %148 = vmatpush1.bf16.msra.mxu0 0
    %149 = vmatprep.subr.bf16.mxu0 0
    %150 = vmatpush1.bf16.msra.mxu0 0
    %151 = vmatprep.mubr.bf16.mxu0 0
    %152 = vmatmul.mubr.bf16.gmra.mrb[0].mxu0 %v117
    %v153 = vpop.f32.mrb[0].mxu0
    %v154 = vadd.f32 0.0, %v153
    %v155 = vpop.f32.mrb[0].mxu0
    %v156 = vpop.f32.mrb[0].mxu0
    %v157 = vpop.f32.mrb[0].mxu0
    %158 = vdwg.mxu0
    %v163 = vunpack.c.l.b16 %v102
    %v164 = vunpack.c.l.b16 %v103
    %v165 = vunpack.c.l.b16 %v104
    %v166 = vunpack.c.l.b16 %v105
    %v167 = vpack.c.b16 %v164, %v163
    %v168 = vpack.c.b16 %v166, %v165
    %vm171 = vcmask 261120
    %v173 = vsel %vm171, %v101, 0
    %175 = vmatprep.subr.bf16.mxu0 0
    %176 = vmatpush1.bf16.msra.mxu0 %v167
    %177 = vmatprep.subr.bf16.mxu0 0
    %178 = vmatpush1.bf16.msra.mxu0 %v168
    %179 = vmatprep.subr.bf16.mxu0 0
    %180 = vmatpush1.bf16.msra.mxu0 0
    %181 = vmatprep.subr.bf16.mxu0 0
    %182 = vmatpush1.bf16.msra.mxu0 0
    %183 = vmatprep.subr.bf16.mxu0 0
    %184 = vmatpush1.bf16.msra.mxu0 0
    %185 = vmatprep.subr.bf16.mxu0 0
    %186 = vmatpush1.bf16.msra.mxu0 0
    %187 = vmatprep.subr.bf16.mxu0 0
    %188 = vmatpush1.bf16.msra.mxu0 0
    %189 = vmatprep.subr.bf16.mxu0 0
    %190 = vmatpush1.bf16.msra.mxu0 0
    %191 = vmatprep.subr.bf16.mxu0 0
    %192 = vmatpush1.bf16.msra.mxu0 0
    %193 = vmatprep.subr.bf16.mxu0 0
    %194 = vmatpush1.bf16.msra.mxu0 0
    %195 = vmatprep.subr.bf16.mxu0 0
    %196 = vmatpush1.bf16.msra.mxu0 0
    %197 = vmatprep.subr.bf16.mxu0 0
    %198 = vmatpush1.bf16.msra.mxu0 0
    %199 = vmatprep.subr.bf16.mxu0 0
    %200 = vmatpush1.bf16.msra.mxu0 0
    %201 = vmatprep.subr.bf16.mxu0 0
    %202 = vmatpush1.bf16.msra.mxu0 0
    %203 = vmatprep.subr.bf16.mxu0 0
    %204 = vmatpush1.bf16.msra.mxu0 0
    %205 = vmatprep.subr.bf16.mxu0 0
    %206 = vmatpush1.bf16.msra.mxu0 0
    %207 = vmatprep.mubr.bf16.mxu0 0
    %208 = vmatmul.mubr.bf16.gmra.mrb[0].mxu0 %v173
    %v209 = vpop.f32.mrb[0].mxu0
    %v210 = vadd.f32 %v154, %v209
    %v211 = vpop.f32.mrb[0].mxu0
    %v212 = vpop.f32.mrb[0].mxu0
    %v213 = vpop.f32.mrb[0].mxu0
    %214 = vdwg.mxu0
    %v215 = vld [vmem:[%s93] sm:$0x1]
    %v216 = vlaneseq
    %v217 = vshrl.u32 %v216, 7
    %v218 = vsub.s32 0, %v217
    %v219 = vrot.slane %v215, %v218
    %v220 = vadd.f32 %v210, %v219
    %v221 = vmul.f32 %v220, 0.2
    %v222 = vmax.f32 %v220, %v221
    %v223 = vld [vmem:[%s93 + $0x1] sm:$0x1]
    %v224 = vlaneseq
    %v225 = vshrl.u32 %v224, 7
    %v226 = vsub.s32 0, %v225
    %v227 = vrot.slane %v223, %v226
    %v228 = vmul.f32 %v222, %v227
    %v229 = vld [vmem:[#allocation2] sm:$0xff]
    %v230 = vadd.f32 %v229, %v228
    %231 = vst [vmem:[#allocation2] sm:$0xff] %v230
    // Predicated region
    $region38: #{tpu_custom_call.1} parent=1 // pred_check
      %p232 = pneg %p96
    $region39: #{tpu_custom_call.1} parent=1 // pred_check_branch
      %234 = sbr.rel (%p232) target = $region41
    $region40: #{tpu_custom_call.1} parent=1 // pred_region
      %v235 = vld [vmem:[#allocation2] sm:$0xff]
      %236 = vadd.xlane.f32.xlu0 %v235
      %v237 = vpop.xlane.xlu0 %236
      %vm238 = vcmask 7168
      %239 = vst.msk [vmem:[%s5] sm:$0xff] %vm238, %v237
    $region41: #{tpu_custom_call.1} parent=1 // pred_fallthru
      _
    // Predicated region
    $region42: #{tpu_custom_call.1} parent=1 // pred_check
      _
    $region43: #{tpu_custom_call.1} parent=1 // pred_check_branch
      %241 = sbr.rel (0) target = $region45
    $region44: #{tpu_custom_call.1} parent=1 // pred_region
      _
    $region45: #{tpu_custom_call.1} parent=1 // pred_fallthru
      _
    // Predicated region
    $region46: #{tpu_custom_call.1} parent=1 // pred_check
      _
    $region47: #{tpu_custom_call.1} parent=1 // pred_check_branch
      %243 = sbr.rel (0) target = $region49
    $region48: #{tpu_custom_call.1} parent=1 // pred_region
      _
    $region49: #{tpu_custom_call.1} parent=1 // pred_fallthru
      _
    %244 = vsyncpa [#allocation4], 1
    %245 = vsyncpa [#allocation6], 1

</llo_original>
